<compile_context>
chip_gen: v6e
topology: v6e:2x2x1
jax: 0.10.0
libtpu: 0.0.40
codegen_flags: <defaults>
</compile_context>

<pallas_src>
import math

import jax
import jax.numpy as jnp
from jax import lax
from jax.experimental import pallas as pl
from jax.experimental.pallas import tpu as pltpu

d_k = d_v = 64
d_ff = 2048
_SCALE = 1.0 / math.sqrt(d_k)
_MASK_FILL = -1000000000.0
_LN_EPS = 1e-5


# --------------------------------------------------------------------------
# Scaled-dot-product attention core (all heads of one batch per grid step)
# --------------------------------------------------------------------------
def _make_mha_kernel(n_heads):
    def kernel(q_ref, k_ref, v_ref, mask_ref, ctx_ref, attn_ref):
        # q_ref: (H, Lq, d_k)  k_ref: (H, Lk, d_k)  v_ref: (H, Lk, d_v)
        # mask_ref: (Lq, Lk) int32 (nonzero == masked)
        # ctx_ref: (Lq, H*d_v)   attn_ref: (H, Lq, Lk)
        mask = mask_ref[...] != 0
        ctx_heads = []
        for h in range(n_heads):  # static unroll over heads
            qh = q_ref[h].astype(jnp.bfloat16)
            kh = k_ref[h].astype(jnp.bfloat16)
            vh = v_ref[h].astype(jnp.bfloat16)

            # scores = Q @ K^T / sqrt(d_k)  (contract last dims, no transpose)
            s = lax.dot_general(
                qh, kh, (((1,), (1,)), ((), ())),
                preferred_element_type=jnp.float32) * _SCALE
            s = jnp.where(mask, jnp.float32(_MASK_FILL), s)

            # numerically-stable softmax (f32)
            m = jnp.max(s, axis=-1, keepdims=True)
            e = jnp.exp(s - m)
            denom = jnp.sum(e, axis=-1, keepdims=True)
            p = e * pl.reciprocal(denom, approx=True)

            attn_ref[h] = p.astype(attn_ref.dtype)
            ctx_heads.append(
                jnp.dot(p.astype(jnp.bfloat16), vh,
                        preferred_element_type=jnp.float32))

        # lane-dense store: (Lq, H*d_v) == 512 lanes
        ctx_ref[...] = jnp.concatenate(ctx_heads, axis=-1).astype(ctx_ref.dtype)

    return kernel


def mha_attention(Q, K, V, attn_mask):
    """Q/K/V: [B, H, L, d] ; attn_mask: [B, Lq, Lk] bool (True == masked).
    Returns (context [B, Lq, H*d_v], attn [B, H, Lq, Lk])."""
    B, H, Lq, dk = Q.shape
    Lk = K.shape[2]
    dv = V.shape[3]
    mask_i32 = attn_mask.astype(jnp.int32)  # one mask per batch, shared by heads

    ctx, attn = pl.pallas_call(
        _make_mha_kernel(H),
        out_shape=(
            jax.ShapeDtypeStruct((B, Lq, H * dv), Q.dtype),
            jax.ShapeDtypeStruct((B, H, Lq, Lk), jnp.float32),
        ),
        grid_spec=pltpu.PrefetchScalarGridSpec(
            num_scalar_prefetch=0,
            grid=(B,),
            in_specs=[
                pl.BlockSpec((pl.Squeezed(), H, Lq, dk), lambda b: (b, 0, 0, 0)),
                pl.BlockSpec((pl.Squeezed(), H, Lk, dk), lambda b: (b, 0, 0, 0)),
                pl.BlockSpec((pl.Squeezed(), H, Lk, dv), lambda b: (b, 0, 0, 0)),
                pl.BlockSpec((pl.Squeezed(), Lq, Lk), lambda b: (b, 0, 0)),
            ],
            out_specs=[
                pl.BlockSpec((pl.Squeezed(), Lq, H * dv), lambda b: (b, 0, 0)),
                pl.BlockSpec((pl.Squeezed(), H, Lq, Lk), lambda b: (b, 0, 0, 0)),
            ],
        ),
        compiler_params=pltpu.CompilerParams(
            dimension_semantics=("parallel",),
            vmem_limit_bytes=32 * 1024 * 1024,
        ),
    )(Q, K, V, mask_i32)
    return ctx, attn


# --------------------------------------------------------------------------
# Linear / LayerNorm kernels (small shapes -> single-block pallas_calls)
# --------------------------------------------------------------------------
def _layer_norm(y):
    mean = jnp.mean(y, axis=-1, keepdims=True)
    yc = y - mean
    var = jnp.mean(yc * yc, axis=-1, keepdims=True)
    return yc * lax.rsqrt(var + _LN_EPS)


def _qkv_proj_kernel(x_ref, wq_ref, wk_ref, wv_ref, q_ref, k_ref, v_ref):
    x = x_ref[...]
    q_ref[...] = jnp.dot(x, wq_ref[...],
                         preferred_element_type=jnp.float32).astype(q_ref.dtype)
    k_ref[...] = jnp.dot(x, wk_ref[...],
                         preferred_element_type=jnp.float32).astype(k_ref.dtype)
    v_ref[...] = jnp.dot(x, wv_ref[...],
                         preferred_element_type=jnp.float32).astype(v_ref.dtype)


def _out_proj_ln_kernel(ctx_ref, wo_ref, res_ref, out_ref):
    y = jnp.dot(ctx_ref[...], wo_ref[...],
                preferred_element_type=jnp.float32) + res_ref[...]
    out_ref[...] = _layer_norm(y).astype(out_ref.dtype)


def _ffn_ln_kernel(x_ref, w1_ref, w2_ref, out_ref):
    x = x_ref[...]
    h = jnp.maximum(
        jnp.dot(x, w1_ref[...], preferred_element_type=jnp.float32), 0.0)
    y = jnp.dot(h, w2_ref[...], preferred_element_type=jnp.float32) + x
    out_ref[...] = _layer_norm(y).astype(out_ref.dtype)


# --------------------------------------------------------------------------
# EncoderLayer forward
# --------------------------------------------------------------------------
def encoder_layer(x, attn_mask, params):
    """x: [B, L, d_model]; attn_mask: [B, L, L] bool (True == masked).
    params = (wq, wk, wv, wo, w1, w2), all stored [in, out]."""
    wq, wk, wv, wo, w1, w2 = params
    B, L, D = x.shape
    H = wq.shape[1] // d_k
    x2d = x.reshape(B * L, D)

    # ---- Q/K/V projections (one fused kernel) ----
    q2d, k2d, v2d = pl.pallas_call(
        _qkv_proj_kernel,
        out_shape=(
            jax.ShapeDtypeStruct((B * L, H * d_k), x.dtype),
            jax.ShapeDtypeStruct((B * L, H * d_k), x.dtype),
            jax.ShapeDtypeStruct((B * L, H * d_v), x.dtype),
        ),
    )(x2d, wq, wk, wv)

    def split_heads(t, d):  # wrapper-side layout plumbing
        return t.reshape(B, L, H, d).transpose(0, 2, 1, 3)

    Q = split_heads(q2d, d_k)
    K = split_heads(k2d, d_k)
    V = split_heads(v2d, d_v)

    # ---- attention core (ctx already laid out [B, L, H*d_v]) ----
    ctx, attn = mha_attention(Q, K, V, attn_mask)
    ctx2d = ctx.reshape(B * L, H * d_v)

    # ---- output projection + residual + LayerNorm ----
    attn_out = pl.pallas_call(
        _out_proj_ln_kernel,
        out_shape=jax.ShapeDtypeStruct((B * L, D), x.dtype),
    )(ctx2d, wo, x2d)

    # ---- position-wise FFN + residual + LayerNorm ----
    enc_out = pl.pallas_call(
        _ffn_ln_kernel,
        out_shape=jax.ShapeDtypeStruct((B * L, D), x.dtype),
    )(attn_out, w1, w2)

    return enc_out.reshape(B, L, D), attn


# --------------------------------------------------------------------------
# Pure-JAX reference (mirrors the PyTorch forward)
# --------------------------------------------------------------------------
def _reference(x, attn_mask, params):
    wq, wk, wv, wo, w1, w2 = params
    B, L, D = x.shape
    H = wq.shape[1] // d_k

    q = (x @ wq).reshape(B, L, H, d_k).transpose(0, 2, 1, 3)
    k = (x @ wk).reshape(B, L, H, d_k).transpose(0, 2, 1, 3)
    v = (x @ wv).reshape(B, L, H, d_v).transpose(0, 2, 1, 3)

    scores = jnp.einsum("bhqd,bhkd->bhqk", q, k) / math.sqrt(d_k)
    scores = jnp.where(attn_mask[:, None, :, :], _MASK_FILL, scores)
    attn = jax.nn.softmax(scores, axis=-1)
    ctx = jnp.einsum("bhqk,bhkd->bhqd", attn, v)
    ctx = ctx.transpose(0, 2, 1, 3).reshape(B, L, H * d_v)

    def ln(y):
        mean = jnp.mean(y, axis=-1, keepdims=True)
        var = jnp.mean((y - mean) ** 2, axis=-1, keepdims=True)
        return (y - mean) / jnp.sqrt(var + _LN_EPS)

    out1 = ln(ctx @ wo + x)
    out2 = ln(jnp.maximum(out1 @ w1, 0.0) @ w2 + out1)
    return out2, attn


if __name__ == "__main__":
    key = jax.random.PRNGKey(0)
    kx, kq, kk, kv, ko, k1, k2 = jax.random.split(key, 7)

    B, L, D, H = 2, 8, 128, 8  # batch, seq_len, d_model, n_heads
    x = jax.random.normal(kx, (B, L, D), dtype=jnp.float32)

    def init(k, shape):
        return jax.random.normal(k, shape, dtype=jnp.float32) / math.sqrt(shape[0])

    params = (
        init(kq, (D, H * d_k)),      # W_Q^T
        init(kk, (D, H * d_k)),      # W_K^T
        init(kv, (D, H * d_v)),      # W_V^T
        init(ko, (H * d_v, D)),      # fc^T
        init(k1, (D, d_ff)),         # ffn W1^T
        init(k2, (d_ff, D)),         # ffn W2^T
    )

    # padding-style self-attention mask (True == masked), shared across heads
    lens = jnp.array([L, L - 2])
    key_idx = jnp.arange(L)
    attn_mask = jnp.broadcast_to(
        key_idx[None, None, :] >= lens[:, None, None], (B, L, L))

    out, attn = encoder_layer(x, attn_mask, params)
    jax.block_until_ready((out, attn))

    ref_out, ref_attn = _reference(x, attn_mask, params)
    assert out.shape == (B, L, D) and attn.shape == (B, H, L, L)
    assert jnp.allclose(attn, ref_attn, atol=3e-2, rtol=3e-2), \
        float(jnp.max(jnp.abs(attn - ref_attn)))
    assert jnp.allclose(out, ref_out, atol=5e-2, rtol=5e-2), \
        float(jnp.max(jnp.abs(out - ref_out)))

    print("KERNEL_OK")
</pallas_src>

<mosaic_0001>
module attributes {stable_mosaic.version = 11 : i64} {
  func.func @_qkv_proj_kernel(%arg0: memref<16x128xf32, #tpu.memory_space<vmem>>, %arg1: memref<128x512xf32, #tpu.memory_space<vmem>>, %arg2: memref<128x512xf32, #tpu.memory_space<vmem>>, %arg3: memref<128x512xf32, #tpu.memory_space<vmem>>, %arg4: memref<16x512xf32, #tpu.memory_space<vmem>>, %arg5: memref<16x512xf32, #tpu.memory_space<vmem>>, %arg6: memref<16x512xf32, #tpu.memory_space<vmem>>) attributes {dimension_semantics = [], scalar_prefetch = 0 : i64, scratch_operands = 0 : i64, tpu.core_type = #tpu.core_type<tc>} {
    %c0 = arith.constant 0 : index
    %c0_0 = arith.constant 0 : index
    %0 = vector.load %arg0[%c0, %c0_0] : memref<16x128xf32, #tpu.memory_space<vmem>>, vector<16x128xf32>
    %c0_1 = arith.constant 0 : index
    %c0_2 = arith.constant 0 : index
    %1 = vector.load %arg1[%c0_1, %c0_2] : memref<128x512xf32, #tpu.memory_space<vmem>>, vector<128x512xf32>
    %cst = arith.constant dense<0.000000e+00> : vector<16x512xf32>
    %2 = tpu.matmul %0, %1, %cst {dimension_numbers = #tpu.dot_dimension_numbers<[1], [0], [0], [1], [0, 0, 1, 1], [], []>} : vector<16x128xf32>, vector<128x512xf32>, vector<16x512xf32> -> vector<16x512xf32>
    %c0_3 = arith.constant 0 : index
    %c0_4 = arith.constant 0 : index
    %3 = vector.load %arg4[%c0_3, %c0_4] : memref<16x512xf32, #tpu.memory_space<vmem>>, vector<16x512xf32>
    tpu.vector_store %arg4[%c0_3, %c0_4], %2 {strides = array<i32>} : memref<16x512xf32, #tpu.memory_space<vmem>>, vector<16x512xf32>,
    %c0_5 = arith.constant 0 : index
    %c0_6 = arith.constant 0 : index
    %4 = vector.load %arg2[%c0_5, %c0_6] : memref<128x512xf32, #tpu.memory_space<vmem>>, vector<128x512xf32>
    %cst_7 = arith.constant dense<0.000000e+00> : vector<16x512xf32>
    %5 = tpu.matmul %0, %4, %cst_7 {dimension_numbers = #tpu.dot_dimension_numbers<[1], [0], [0], [1], [0, 0, 1, 1], [], []>} : vector<16x128xf32>, vector<128x512xf32>, vector<16x512xf32> -> vector<16x512xf32>
    %c0_8 = arith.constant 0 : index
    %c0_9 = arith.constant 0 : index
    %6 = vector.load %arg5[%c0_8, %c0_9] : memref<16x512xf32, #tpu.memory_space<vmem>>, vector<16x512xf32>
    tpu.vector_store %arg5[%c0_8, %c0_9], %5 {strides = array<i32>} : memref<16x512xf32, #tpu.memory_space<vmem>>, vector<16x512xf32>,
    %c0_10 = arith.constant 0 : index
    %c0_11 = arith.constant 0 : index
    %7 = vector.load %arg3[%c0_10, %c0_11] : memref<128x512xf32, #tpu.memory_space<vmem>>, vector<128x512xf32>
    %cst_12 = arith.constant dense<0.000000e+00> : vector<16x512xf32>
    %8 = tpu.matmul %0, %7, %cst_12 {dimension_numbers = #tpu.dot_dimension_numbers<[1], [0], [0], [1], [0, 0, 1, 1], [], []>} : vector<16x128xf32>, vector<128x512xf32>, vector<16x512xf32> -> vector<16x512xf32>
    %c0_13 = arith.constant 0 : index
    %c0_14 = arith.constant 0 : index
    %9 = vector.load %arg6[%c0_13, %c0_14] : memref<16x512xf32, #tpu.memory_space<vmem>>, vector<16x512xf32>
    tpu.vector_store %arg6[%c0_13, %c0_14], %8 {strides = array<i32>} : memref<16x512xf32, #tpu.memory_space<vmem>>, vector<16x512xf32>,
    return
  }
}

</mosaic_0001>

<llo_original>
// kernel: tpu_custom_call.1
$region0: #{tpu_custom_call.1}
  #allocation0 [shape = 'u32[]', space=smem, size = 0x4, offset = 0x4, fixed_abs, tag = 'smem constant byte address 0x4 - core index']
  #allocation1 [shape = 'u32[144,128]{1,0:T(1,128)}', space=vmem, size = 0x12000, scoped, tag = 'internal scratch']
  %s0 = inlined_call_operand.hbm [shape: f32[16,128], index: 0, kind: input, shape index: {}]
  %s1 = inlined_call_operand.hbm [shape: f32[128,512], index: 1, kind: input, shape index: {}]
  %s2 = inlined_call_operand.hbm [shape: f32[128,512], index: 2, kind: input, shape index: {}]
  %s3 = inlined_call_operand.hbm [shape: f32[128,512], index: 3, kind: input, shape index: {}]
  %s4 = inlined_call_operand.hbm [shape: f32[16,512], index: 4, kind: output, shape index: {0}]
  %s5 = inlined_call_operand.hbm [shape: f32[16,512], index: 5, kind: output, shape index: {1}]
  %s6 = inlined_call_operand.hbm [shape: f32[16,512], index: 6, kind: output, shape index: {2}]
  %7 = xla_tuple %s4, %s5, %s6
  %s8 = sld [smem:[#allocation0]]
  $region58: #{tpu_custom_call.1} parent=0
    _
  %s10 = ssub.s32 1, %s8
  %s11 = scalar_select 0, %s10, %s8
  $region1: #{tpu_custom_call.1} parent=0
    #allocation2 [shape = 'u8[8192]{0}', space=vmem, size = 0x2000, scoped, tag = 'input window, operand 0, single buffered']
    #allocation3 [shape = 's32[1]{0}', space=sflag, size = 0x4, scoped, tag = 'scoped memory for tpu_custom_call.1']
    #allocation4 [shape = 's32[1]{0}', space=sflag, size = 0x4, scoped, tag = 'scoped memory for tpu_custom_call.1']
    #allocation5 [shape = 'u8[262144]{0}', space=vmem, size = 0x40000, scoped, tag = 'input window, operand 1, single buffered']
    #allocation6 [shape = 's32[1]{0}', space=sflag, size = 0x4, scoped, tag = 'scoped memory for tpu_custom_call.1']
    #allocation7 [shape = 'u8[262144]{0}', space=vmem, size = 0x40000, scoped, tag = 'input window, operand 2, single buffered']
    #allocation8 [shape = 'u8[262144]{0}', space=vmem, size = 0x40000, scoped, tag = 'input window, operand 3, single buffered']
    #allocation9 [shape = 's32[1]{0}', space=sflag, size = 0x4, scoped, tag = 'scoped memory for tpu_custom_call.1']
    #allocation10 [shape = 'u8[32768]{0}', space=vmem, size = 0x8000, scoped, tag = 'output window, operand 0, single buffered']
    #allocation11 [shape = 'u8[32768]{0}', space=vmem, size = 0x8000, scoped, tag = 'output window, operand 1, single buffered']
    #allocation12 [shape = 's32[1]{0}', space=sflag, size = 0x4, scoped, tag = 'scoped memory for tpu_custom_call.1']
    #allocation13 [shape = 'u8[32768]{0}', space=vmem, size = 0x8000, scoped, tag = 'output window, operand 2, single buffered']
    %12 = vsyncpa [#allocation3], 0
    %13 = vsyncpa [#allocation6], 0
    %14 = vsyncpa [#allocation9], 0
    %15 = vsyncpa [#allocation4], 0
    %16 = vsyncpa [#allocation12], 0
    // Predicated region
    $region2: #{tpu_custom_call.1} parent=1 // pred_check
      _
    $region3: #{tpu_custom_call.1} parent=1 // pred_check_branch
      %18 = sbr.rel (0) target = $region5
    $region4: #{tpu_custom_call.1} parent=1 // pred_region
      %s20 = ssub.s32 256, 256
      %21 = vsyncadd [#allocation3], %s20
      %s22 = sshll.u32 [#allocation2], 4
      %s23 = int_to_ptr.vmem [resolvable:$true] %s22
      %28 = dma.hbm_to_vmem [thread:$0]  %s0, 256, %s23, [#allocation3], 128, 128, 8
    $region5: #{tpu_custom_call.1} parent=1 // pred_fallthru
      _
    // Predicated region
    $region6: #{tpu_custom_call.1} parent=1 // pred_check
      _
    $region7: #{tpu_custom_call.1} parent=1 // pred_check_branch
      %30 = sbr.rel (0) target = $region9
    $region8: #{tpu_custom_call.1} parent=1 // pred_region
      %s32 = ssub.s32 8192, 8192
      %33 = vsyncadd [#allocation6], %s32
      %s34 = sshll.u32 [#allocation5], 4
      %s35 = int_to_ptr.vmem [resolvable:$true] %s34
      %40 = dma.hbm_to_vmem [thread:$0]  %s1, 8192, %s35, [#allocation6], 512, 512, 32
    $region9: #{tpu_custom_call.1} parent=1 // pred_fallthru
      _
    // Predicated region
    $region10: #{tpu_custom_call.1} parent=1 // pred_check
      _
    $region11: #{tpu_custom_call.1} parent=1 // pred_check_branch
      %42 = sbr.rel (0) target = $region13
    $region12: #{tpu_custom_call.1} parent=1 // pred_region
      %s44 = ssub.s32 8192, 8192
      %45 = vsyncadd [#allocation6], %s44
      %s46 = sshll.u32 [#allocation7], 4
      %s47 = int_to_ptr.vmem [resolvable:$true] %s46
      %52 = dma.hbm_to_vmem [thread:$0]  %s2, 8192, %s47, [#allocation6], 512, 512, 32
    $region13: #{tpu_custom_call.1} parent=1 // pred_fallthru
      _
    // Predicated region
    $region14: #{tpu_custom_call.1} parent=1 // pred_check
      _
    $region15: #{tpu_custom_call.1} parent=1 // pred_check_branch
      %54 = sbr.rel (0) target = $region17
    $region16: #{tpu_custom_call.1} parent=1 // pred_region
      %s56 = ssub.s32 8192, 8192
      %57 = vsyncadd [#allocation9], %s56
      %s58 = sshll.u32 [#allocation8], 4
      %s59 = int_to_ptr.vmem [resolvable:$true] %s58
      %64 = dma.hbm_to_vmem [thread:$0]  %s3, 8192, %s59, [#allocation9], 512, 512, 32
    $region17: #{tpu_custom_call.1} parent=1 // pred_fallthru
      _
    // Predicated region
    $region18: #{tpu_custom_call.1} parent=1 // pred_check
      _
    $region19: #{tpu_custom_call.1} parent=1 // pred_check_branch
      %66 = sbr.rel (0) target = $region21
    $region20: #{tpu_custom_call.1} parent=1 // pred_region
      %67 = dma.done [#allocation3], 256
    $region21: #{tpu_custom_call.1} parent=1 // pred_fallthru
      _
    // Predicated region
    $region22: #{tpu_custom_call.1} parent=1 // pred_check
      _
    $region23: #{tpu_custom_call.1} parent=1 // pred_check_branch
      %69 = sbr.rel (0) target = $region25
    $region24: #{tpu_custom_call.1} parent=1 // pred_region
      %70 = dma.done [#allocation6], 8192
    $region25: #{tpu_custom_call.1} parent=1 // pred_fallthru
      _
    // Predicated region
    $region26: #{tpu_custom_call.1} parent=1 // pred_check
      _
    $region27: #{tpu_custom_call.1} parent=1 // pred_check_branch
      %72 = sbr.rel (0) target = $region29
    $region28: #{tpu_custom_call.1} parent=1 // pred_region
      %73 = dma.done [#allocation6], 8192
    $region29: #{tpu_custom_call.1} parent=1 // pred_fallthru
      _
    // Predicated region
    $region30: #{tpu_custom_call.1} parent=1 // pred_check
      _
    $region31: #{tpu_custom_call.1} parent=1 // pred_check_branch
      %75 = sbr.rel (0) target = $region33
    $region32: #{tpu_custom_call.1} parent=1 // pred_region
      %76 = dma.done [#allocation9], 8192
    $region33: #{tpu_custom_call.1} parent=1 // pred_fallthru
      _
    %v77 = vld [vmem:[#allocation2] sm:$0xff]
    %v78 = vld [vmem:[#allocation2 + $0x8] sm:$0xff]
    %v79 = vld [vmem:[#allocation5] sm:$0xff]
    %v80 = vld [vmem:[#allocation5 + $0x8] sm:$0xff]
    %v81 = vld [vmem:[#allocation5 + $0x10] sm:$0xff]
    %v82 = vld [vmem:[#allocation5 + $0x18] sm:$0xff]
    %v83 = vld [vmem:[#allocation5 + $0x20] sm:$0xff]
    %v84 = vld [vmem:[#allocation5 + $0x28] sm:$0xff]
    %v85 = vld [vmem:[#allocation5 + $0x30] sm:$0xff]
    %v86 = vld [vmem:[#allocation5 + $0x38] sm:$0xff]
    %v87 = vld [vmem:[#allocation5 + $0x40] sm:$0xff]
    %v88 = vld [vmem:[#allocation5 + $0x48] sm:$0xff]
    %v89 = vld [vmem:[#allocation5 + $0x50] sm:$0xff]
    %v90 = vld [vmem:[#allocation5 + $0x58] sm:$0xff]
    %v91 = vld [vmem:[#allocation5 + $0x60] sm:$0xff]
    %v92 = vld [vmem:[#allocation5 + $0x68] sm:$0xff]
    %v93 = vld [vmem:[#allocation5 + $0x70] sm:$0xff]
    %v94 = vld [vmem:[#allocation5 + $0x78] sm:$0xff]
    %v95 = vld [vmem:[#allocation5 + $0x80] sm:$0xff]
    %v96 = vld [vmem:[#allocation5 + $0x88] sm:$0xff]
    %v97 = vld [vmem:[#allocation5 + $0x90] sm:$0xff]
    %v98 = vld [vmem:[#allocation5 + $0x98] sm:$0xff]
    %v99 = vld [vmem:[#allocation5 + $0xa0] sm:$0xff]
    %v100 = vld [vmem:[#allocation5 + $0xa8] sm:$0xff]
    %v101 = vld [vmem:[#allocation5 + $0xb0] sm:$0xff]
    %v102 = vld [vmem:[#allocation5 + $0xb8] sm:$0xff]
    %v103 = vld [vmem:[#allocation5 + $0xc0] sm:$0xff]
    %v104 = vld [vmem:[#allocation5 + $0xc8] sm:$0xff]
    %v105 = vld [vmem:[#allocation5 + $0xd0] sm:$0xff]
    %v106 = vld [vmem:[#allocation5 + $0xd8] sm:$0xff]
    %v107 = vld [vmem:[#allocation5 + $0xe0] sm:$0xff]
    %v108 = vld [vmem:[#allocation5 + $0xe8] sm:$0xff]
    %v109 = vld [vmem:[#allocation5 + $0xf0] sm:$0xff]
    %v110 = vld [vmem:[#allocation5 + $0xf8] sm:$0xff]
    %v111 = vld [vmem:[#allocation5 + $0x100] sm:$0xff]
    %v112 = vld [vmem:[#allocation5 + $0x108] sm:$0xff]
    %v113 = vld [vmem:[#allocation5 + $0x110] sm:$0xff]
    %v114 = vld [vmem:[#allocation5 + $0x118] sm:$0xff]
    %v115 = vld [vmem:[#allocation5 + $0x120] sm:$0xff]
    %v116 = vld [vmem:[#allocation5 + $0x128] sm:$0xff]
    %v117 = vld [vmem:[#allocation5 + $0x130] sm:$0xff]
    %v118 = vld [vmem:[#allocation5 + $0x138] sm:$0xff]
    %v119 = vld [vmem:[#allocation5 + $0x140] sm:$0xff]
    %v120 = vld [vmem:[#allocation5 + $0x148] sm:$0xff]
    %v121 = vld [vmem:[#allocation5 + $0x150] sm:$0xff]
    %v122 = vld [vmem:[#allocation5 + $0x158] sm:$0xff]
    %v123 = vld [vmem:[#allocation5 + $0x160] sm:$0xff]
    %v124 = vld [vmem:[#allocation5 + $0x168] sm:$0xff]
    %v125 = vld [vmem:[#allocation5 + $0x170] sm:$0xff]
    %v126 = vld [vmem:[#allocation5 + $0x178] sm:$0xff]
    %v127 = vld [vmem:[#allocation5 + $0x180] sm:$0xff]
    %v128 = vld [vmem:[#allocation5 + $0x188] sm:$0xff]
    %v129 = vld [vmem:[#allocation5 + $0x190] sm:$0xff]
    %v130 = vld [vmem:[#allocation5 + $0x198] sm:$0xff]
    %v131 = vld [vmem:[#allocation5 + $0x1a0] sm:$0xff]
    %v132 = vld [vmem:[#allocation5 + $0x1a8] sm:$0xff]
    %v133 = vld [vmem:[#allocation5 + $0x1b0] sm:$0xff]
    %v134 = vld [vmem:[#allocation5 + $0x1b8] sm:$0xff]
    %v135 = vld [vmem:[#allocation5 + $0x1c0] sm:$0xff]
    %v136 = vld [vmem:[#allocation5 + $0x1c8] sm:$0xff]
    %v137 = vld [vmem:[#allocation5 + $0x1d0] sm:$0xff]
    %v138 = vld [vmem:[#allocation5 + $0x1d8] sm:$0xff]
    %v139 = vld [vmem:[#allocation5 + $0x1e0] sm:$0xff]
    %v140 = vld [vmem:[#allocation5 + $0x1e8] sm:$0xff]
    %v141 = vld [vmem:[#allocation5 + $0x1f0] sm:$0xff]
    %v142 = vld [vmem:[#allocation5 + $0x1f8] sm:$0xff]
    %143 = vmatprep.subr.mxu0 %v140
    %144 = vmatpush1.msra.mxu0 %v139
    %145 = vmatprep.subr.mxu0 %v136
    %146 = vmatpush1.msra.mxu0 %v135
    %147 = vmatprep.subr.mxu0 %v132
    %148 = vmatpush1.msra.mxu0 %v131
    %149 = vmatprep.subr.mxu0 %v128
    %150 = vmatpush1.msra.mxu0 %v127
    %151 = vmatprep.subr.mxu0 %v124
    %152 = vmatpush1.msra.mxu0 %v123
    %153 = vmatprep.subr.mxu0 %v120
    %154 = vmatpush1.msra.mxu0 %v119
    %155 = vmatprep.subr.mxu0 %v116
    %156 = vmatpush1.msra.mxu0 %v115
    %157 = vmatprep.subr.mxu0 %v112
    %158 = vmatpush1.msra.mxu0 %v111
    %159 = vmatprep.subr.mxu0 %v108
    %160 = vmatpush1.msra.mxu0 %v107
    %161 = vmatprep.subr.mxu0 %v104
    %162 = vmatpush1.msra.mxu0 %v103
    %163 = vmatprep.subr.mxu0 %v100
    %164 = vmatpush1.msra.mxu0 %v99
    %165 = vmatprep.subr.mxu0 %v96
    %166 = vmatpush1.msra.mxu0 %v95
    %167 = vmatprep.subr.mxu0 %v92
    %168 = vmatpush1.msra.mxu0 %v91
    %169 = vmatprep.subr.mxu0 %v88
    %170 = vmatpush1.msra.mxu0 %v87
    %171 = vmatprep.subr.mxu0 %v84
    %172 = vmatpush1.msra.mxu0 %v83
    %173 = vmatprep.subr.mxu0 %v80
    %174 = vmatpush1.msra.mxu0 %v79
    %175 = vmatprep.subr.mxu0 0.0
    %176 = vmatpush2.msra.mxu0 0.0
    %177 = vmatprep.subr.mxu0 0.0
    %178 = vmatpush2.msra.mxu0 0.0
    %179 = vmatprep.subr.mxu0 0.0
    %180 = vmatpush2.msra.mxu0 0.0
    %181 = vmatprep.subr.mxu0 0.0
    %182 = vmatpush2.msra.mxu0 0.0
    %183 = vmatprep.subr.mxu0 0.0
    %184 = vmatpush2.msra.mxu0 0.0
    %185 = vmatprep.subr.mxu0 0.0
    %186 = vmatpush2.msra.mxu0 0.0
    %187 = vmatprep.subr.mxu0 0.0
    %188 = vmatpush2.msra.mxu0 0.0
    %189 = vmatprep.subr.mxu0 0.0
    %190 = vmatpush2.msra.mxu0 0.0
    %191 = vmatprep.subr.mxu0 0.0
    %192 = vmatpush2.msra.mxu0 0.0
    %193 = vmatprep.subr.mxu0 0.0
    %194 = vmatpush2.msra.mxu0 0.0
    %195 = vmatprep.subr.mxu0 0.0
    %196 = vmatpush2.msra.mxu0 0.0
    %197 = vmatprep.subr.mxu0 0.0
    %198 = vmatpush2.msra.mxu0 0.0
    %199 = vmatprep.subr.mxu0 0.0
    %200 = vmatpush2.msra.mxu0 0.0
    %201 = vmatprep.subr.mxu0 0.0
    %202 = vmatpush2.msra.mxu0 0.0
    %203 = vmatprep.subr.mxu0 0.0
    %204 = vmatpush2.msra.mxu0 0.0
    %205 = vmatprep.subr.mxu0 0.0
    %206 = vmatpush2.msra.mxu0 0.0
    %207 = vmatprep.mubr.f32.mxu0 0.0
    %208 = vmatmul.mubr.f32.gmra.mxu0 %v77
    %v209 = vpop.f32.mrf.mxu0
    %v210 = vadd.f32 0.0, %v209
    %v211 = vpop.f32.mrf.mxu0
    %v212 = vadd.f32 0.0, %v211
    %213 = vmatprep.mubr.f32.mxu0 0.0
    %214 = vmatmul.mubr.f32.gmra.mxu0 %v78
    %v215 = vpop.f32.mrf.mxu0
    %v216 = vadd.f32 0.0, %v215
    %v217 = vpop.f32.mrf.mxu0
    %v218 = vadd.f32 0.0, %v217
    %219 = vdwg.mxu0
    %220 = vmatprep.subr.mxu0 %v142
    %221 = vmatpush1.msra.mxu0 %v141
    %222 = vmatprep.subr.mxu0 %v138
    %223 = vmatpush1.msra.mxu0 %v137
    %224 = vmatprep.subr.mxu0 %v134
    %225 = vmatpush1.msra.mxu0 %v133
    %226 = vmatprep.subr.mxu0 %v130
    %227 = vmatpush1.msra.mxu0 %v129
    %228 = vmatprep.subr.mxu0 %v126
    %229 = vmatpush1.msra.mxu0 %v125
    %230 = vmatprep.subr.mxu0 %v122
    %231 = vmatpush1.msra.mxu0 %v121
    %232 = vmatprep.subr.mxu0 %v118
    %233 = vmatpush1.msra.mxu0 %v117
    %234 = vmatprep.subr.mxu0 %v114
    %235 = vmatpush1.msra.mxu0 %v113
    %236 = vmatprep.subr.mxu0 %v110
    %237 = vmatpush1.msra.mxu0 %v109
    %238 = vmatprep.subr.mxu0 %v106
    %239 = vmatpush1.msra.mxu0 %v105
    %240 = vmatprep.subr.mxu0 %v102
    %241 = vmatpush1.msra.mxu0 %v101
    %242 = vmatprep.subr.mxu0 %v98
    %243 = vmatpush1.msra.mxu0 %v97
    %244 = vmatprep.subr.mxu0 %v94
    %245 = vmatpush1.msra.mxu0 %v93
    %246 = vmatprep.subr.mxu0 %v90
    %247 = vmatpush1.msra.mxu0 %v89
    %248 = vmatprep.subr.mxu0 %v86
    %249 = vmatpush1.msra.mxu0 %v85
    %250 = vmatprep.subr.mxu0 %v82
    %251 = vmatpush1.msra.mxu0 %v81
    %252 = vmatprep.subr.mxu0 0.0
    %253 = vmatpush2.msra.mxu0 0.0
    %254 = vmatprep.subr.mxu0 0.0
    %255 = vmatpush2.msra.mxu0 0.0
    %256 = vmatprep.subr.mxu0 0.0
    %257 = vmatpush2.msra.mxu0 0.0
    %258 = vmatprep.subr.mxu0 0.0
    %259 = vmatpush2.msra.mxu0 0.0
    %260 = vmatprep.subr.mxu0 0.0
    %261 = vmatpush2.msra.mxu0 0.0
    %262 = vmatprep.subr.mxu0 0.0
    %263 = vmatpush2.msra.mxu0 0.0
    %264 = vmatprep.subr.mxu0 0.0
    %265 = vmatpush2.msra.mxu0 0.0
    %266 = vmatprep.subr.mxu0 0.0
    %267 = vmatpush2.msra.mxu0 0.0
    %268 = vmatprep.subr.mxu0 0.0
    %269 = vmatpush2.msra.mxu0 0.0
    %270 = vmatprep.subr.mxu0 0.0
    %271 = vmatpush2.msra.mxu0 0.0
    %272 = vmatprep.subr.mxu0 0.0
    %273 = vmatpush2.msra.mxu0 0.0
    %274 = vmatprep.subr.mxu0 0.0
    %275 = vmatpush2.msra.mxu0 0.0
    %276 = vmatprep.subr.mxu0 0.0
    %277 = vmatpush2.msra.mxu0 0.0
    %278 = vmatprep.subr.mxu0 0.0
    %279 = vmatpush2.msra.mxu0 0.0
    %280 = vmatprep.subr.mxu0 0.0
    %281 = vmatpush2.msra.mxu0 0.0
    %282 = vmatprep.subr.mxu0 0.0
    %283 = vmatpush2.msra.mxu0 0.0
    %284 = vmatprep.mubr.f32.mxu0 0.0
    %285 = vmatmul.mubr.f32.gmra.mxu0 %v77
    %v286 = vpop.f32.mrf.mxu0
    %v287 = vadd.f32 0.0, %v286
    %v288 = vpop.f32.mrf.mxu0
    %v289 = vadd.f32 0.0, %v288
    %290 = vmatprep.mubr.f32.mxu0 0.0
    %291 = vmatmul.mubr.f32.gmra.mxu0 %v78
    %v292 = vpop.f32.mrf.mxu0
    %v293 = vadd.f32 0.0, %v292
    %v294 = vpop.f32.mrf.mxu0
    %v295 = vadd.f32 0.0, %v294
    %296 = vdwg.mxu0
    %297 = vst [vmem:[#allocation10] sm:$0xff] %v210
    %298 = vst [vmem:[#allocation10 + $0x8] sm:$0xff] %v212
    %299 = vst [vmem:[#allocation10 + $0x10] sm:$0xff] %v287
    %300 = vst [vmem:[#allocation10 + $0x18] sm:$0xff] %v289
    %301 = vst [vmem:[#allocation10 + $0x20] sm:$0xff] %v216
    %302 = vst [vmem:[#allocation10 + $0x28] sm:$0xff] %v218
    %303 = vst [vmem:[#allocation10 + $0x30] sm:$0xff] %v293
    %304 = vst [vmem:[#allocation10 + $0x38] sm:$0xff] %v295
    %v305 = vld [vmem:[#allocation7] sm:$0xff]
    %v306 = vld [vmem:[#allocation7 + $0x8] sm:$0xff]
    %v307 = vld [vmem:[#allocation7 + $0x10] sm:$0xff]
    %v308 = vld [vmem:[#allocation7 + $0x18] sm:$0xff]
    %v309 = vld [vmem:[#allocation7 + $0x20] sm:$0xff]
    %v310 = vld [vmem:[#allocation7 + $0x28] sm:$0xff]
    %v311 = vld [vmem:[#allocation7 + $0x30] sm:$0xff]
    %v312 = vld [vmem:[#allocation7 + $0x38] sm:$0xff]
    %v313 = vld [vmem:[#allocation7 + $0x40] sm:$0xff]
    %v314 = vld [vmem:[#allocation7 + $0x48] sm:$0xff]
    %v315 = vld [vmem:[#allocation7 + $0x50] sm:$0xff]
    %v316 = vld [vmem:[#allocation7 + $0x58] sm:$0xff]
    %v317 = vld [vmem:[#allocation7 + $0x60] sm:$0xff]
    %v318 = vld [vmem:[#allocation7 + $0x68] sm:$0xff]
    %v319 = vld [vmem:[#allocation7 + $0x70] sm:$0xff]
    %v320 = vld [vmem:[#allocation7 + $0x78] sm:$0xff]
    %v321 = vld [vmem:[#allocation7 + $0x80] sm:$0xff]
    %v322 = vld [vmem:[#allocation7 + $0x88] sm:$0xff]
    %v323 = vld [vmem:[#allocation7 + $0x90] sm:$0xff]
    %v324 = vld [vmem:[#allocation7 + $0x98] sm:$0xff]
    %v325 = vld [vmem:[#allocation7 + $0xa0] sm:$0xff]
    %v326 = vld [vmem:[#allocation7 + $0xa8] sm:$0xff]
    %v327 = vld [vmem:[#allocation7 + $0xb0] sm:$0xff]
    %v328 = vld [vmem:[#allocation7 + $0xb8] sm:$0xff]
    %v329 = vld [vmem:[#allocation7 + $0xc0] sm:$0xff]
    %v330 = vld [vmem:[#allocation7 + $0xc8] sm:$0xff]
    %v331 = vld [vmem:[#allocation7 + $0xd0] sm:$0xff]
    %v332 = vld [vmem:[#allocation7 + $0xd8] sm:$0xff]
    %v333 = vld [vmem:[#allocation7 + $0xe0] sm:$0xff]
    %v334 = vld [vmem:[#allocation7 + $0xe8] sm:$0xff]
    %v335 = vld [vmem:[#allocation7 + $0xf0] sm:$0xff]
    %v336 = vld [vmem:[#allocation7 + $0xf8] sm:$0xff]
    %v337 = vld [vmem:[#allocation7 + $0x100] sm:$0xff]
    %v338 = vld [vmem:[#allocation7 + $0x108] sm:$0xff]
    %v339 = vld [vmem:[#allocation7 + $0x110] sm:$0xff]
    %v340 = vld [vmem:[#allocation7 + $0x118] sm:$0xff]
    %v341 = vld [vmem:[#allocation7 + $0x120] sm:$0xff]
    %v342 = vld [vmem:[#allocation7 + $0x128] sm:$0xff]
    %v343 = vld [vmem:[#allocation7 + $0x130] sm:$0xff]
    %v344 = vld [vmem:[#allocation7 + $0x138] sm:$0xff]
    %v345 = vld [vmem:[#allocation7 + $0x140] sm:$0xff]
    %v346 = vld [vmem:[#allocation7 + $0x148] sm:$0xff]
    %v347 = vld [vmem:[#allocation7 + $0x150] sm:$0xff]
    %v348 = vld [vmem:[#allocation7 + $0x158] sm:$0xff]
    %v349 = vld [vmem:[#allocation7 + $0x160] sm:$0xff]
    %v350 = vld [vmem:[#allocation7 + $0x168] sm:$0xff]
    %v351 = vld [vmem:[#allocation7 + $0x170] sm:$0xff]
    %v352 = vld [vmem:[#allocation7 + $0x178] sm:$0xff]
    %v353 = vld [vmem:[#allocation7 + $0x180] sm:$0xff]
    %v354 = vld [vmem:[#allocation7 + $0x188] sm:$0xff]
    %v355 = vld [vmem:[#allocation7 + $0x190] sm:$0xff]
    %v356 = vld [vmem:[#allocation7 + $0x198] sm:$0xff]
    %v357 = vld [vmem:[#allocation7 + $0x1a0] sm:$0xff]
    %v358 = vld [vmem:[#allocation7 + $0x1a8] sm:$0xff]
    %v359 = vld [vmem:[#allocation7 + $0x1b0] sm:$0xff]
    %v360 = vld [vmem:[#allocation7 + $0x1b8] sm:$0xff]
    %v361 = vld [vmem:[#allocation7 + $0x1c0] sm:$0xff]
    %v362 = vld [vmem:[#allocation7 + $0x1c8] sm:$0xff]
    %v363 = vld [vmem:[#allocation7 + $0x1d0] sm:$0xff]
    %v364 = vld [vmem:[#allocation7 + $0x1d8] sm:$0xff]
    %v365 = vld [vmem:[#allocation7 + $0x1e0] sm:$0xff]
    %v366 = vld [vmem:[#allocation7 + $0x1e8] sm:$0xff]
    %v367 = vld [vmem:[#allocation7 + $0x1f0] sm:$0xff]
    %v368 = vld [vmem:[#allocation7 + $0x1f8] sm:$0xff]
    %369 = vmatprep.subr.mxu0 %v366
    %370 = vmatpush1.msra.mxu0 %v365
    %371 = vmatprep.subr.mxu0 %v362
    %372 = vmatpush1.msra.mxu0 %v361
    %373 = vmatprep.subr.mxu0 %v358
    %374 = vmatpush1.msra.mxu0 %v357
    %375 = vmatprep.subr.mxu0 %v354
    %376 = vmatpush1.msra.mxu0 %v353
    %377 = vmatprep.subr.mxu0 %v350
    %378 = vmatpush1.msra.mxu0 %v349
    %379 = vmatprep.subr.mxu0 %v346
    %380 = vmatpush1.msra.mxu0 %v345
    %381 = vmatprep.subr.mxu0 %v342
    %382 = vmatpush1.msra.mxu0 %v341
    %383 = vmatprep.subr.mxu0 %v338
    %384 = vmatpush1.msra.mxu0 %v337
    %385 = vmatprep.subr.mxu0 %v334
    %386 = vmatpush1.msra.mxu0 %v333
    %387 = vmatprep.subr.mxu0 %v330
    %388 = vmatpush1.msra.mxu0 %v329
    %389 = vmatprep.subr.mxu0 %v326
    %390 = vmatpush1.msra.mxu0 %v325
    %391 = vmatprep.subr.mxu0 %v322
    %392 = vmatpush1.msra.mxu0 %v321
    %393 = vmatprep.subr.mxu0 %v318
    %394 = vmatpush1.msra.mxu0 %v317
    %395 = vmatprep.subr.mxu0 %v314
    %396 = vmatpush1.msra.mxu0 %v313
    %397 = vmatprep.subr.mxu0 %v310
    %398 = vmatpush1.msra.mxu0 %v309
    %399 = vmatprep.subr.mxu0 %v306
    %400 = vmatpush1.msra.mxu0 %v305
    %401 = vmatprep.subr.mxu0 0.0
    %402 = vmatpush2.msra.mxu0 0.0
    %403 = vmatprep.subr.mxu0 0.0
    %404 = vmatpush2.msra.mxu0 0.0
    %405 = vmatprep.subr.mxu0 0.0
    %406 = vmatpush2.msra.mxu0 0.0
    %407 = vmatprep.subr.mxu0 0.0
    %408 = vmatpush2.msra.mxu0 0.0
    %409 = vmatprep.subr.mxu0 0.0
    %410 = vmatpush2.msra.mxu0 0.0
    %411 = vmatprep.subr.mxu0 0.0
    %412 = vmatpush2.msra.mxu0 0.0
    %413 = vmatprep.subr.mxu0 0.0
    %414 = vmatpush2.msra.mxu0 0.0
    %415 = vmatprep.subr.mxu0 0.0
    %416 = vmatpush2.msra.mxu0 0.0
    %417 = vmatprep.subr.mxu0 0.0
    %418 = vmatpush2.msra.mxu0 0.0
    %419 = vmatprep.subr.mxu0 0.0
    %420 = vmatpush2.msra.mxu0 0.0
    %421 = vmatprep.subr.mxu0 0.0
    %422 = vmatpush2.msra.mxu0 0.0
    %423 = vmatprep.subr.mxu0 0.0
    %424 = vmatpush2.msra.mxu0 0.0
    %425 = vmatprep.subr.mxu0 0.0
    %426 = vmatpush2.msra.mxu0 0.0
    %427 = vmatprep.subr.mxu0 0.0
    %428 = vmatpush2.msra.mxu0 0.0
    %429 = vmatprep.subr.mxu0 0.0
    %430 = vmatpush2.msra.mxu0 0.0
    %431 = vmatprep.subr.mxu0 0.0
    %432 = vmatpush2.msra.mxu0 0.0
    %433 = vmatprep.mubr.f32.mxu0 0.0
    %434 = vmatmul.mubr.f32.gmra.mxu0 %v77
    %v435 = vpop.f32.mrf.mxu0
    %v436 = vadd.f32 0.0, %v435
    %v437 = vpop.f32.mrf.mxu0
    %v438 = vadd.f32 0.0, %v437
    %439 = vmatprep.mubr.f32.mxu0 0.0
    %440 = vmatmul.mubr.f32.gmra.mxu0 %v78
    %v441 = vpop.f32.mrf.mxu0
    %v442 = vadd.f32 0.0, %v441
    %v443 = vpop.f32.mrf.mxu0
    %v444 = vadd.f32 0.0, %v443
    %445 = vdwg.mxu0
    %446 = vmatprep.subr.mxu0 %v368
    %447 = vmatpush1.msra.mxu0 %v367
    %448 = vmatprep.subr.mxu0 %v364
    %449 = vmatpush1.msra.mxu0 %v363
    %450 = vmatprep.subr.mxu0 %v360
    %451 = vmatpush1.msra.mxu0 %v359
    %452 = vmatprep.subr.mxu0 %v356
    %453 = vmatpush1.msra.mxu0 %v355
    %454 = vmatprep.subr.mxu0 %v352
    %455 = vmatpush1.msra.mxu0 %v351
    %456 = vmatprep.subr.mxu0 %v348
    %457 = vmatpush1.msra.mxu0 %v347
    %458 = vmatprep.subr.mxu0 %v344
    %459 = vmatpush1.msra.mxu0 %v343
    %460 = vmatprep.subr.mxu0 %v340
    %461 = vmatpush1.msra.mxu0 %v339
    %462 = vmatprep.subr.mxu0 %v336
    %463 = vmatpush1.msra.mxu0 %v335
    %464 = vmatprep.subr.mxu0 %v332
    %465 = vmatpush1.msra.mxu0 %v331
    %466 = vmatprep.subr.mxu0 %v328
    %467 = vmatpush1.msra.mxu0 %v327
    %468 = vmatprep.subr.mxu0 %v324
    %469 = vmatpush1.msra.mxu0 %v323
    %470 = vmatprep.subr.mxu0 %v320
    %471 = vmatpush1.msra.mxu0 %v319
    %472 = vmatprep.subr.mxu0 %v316
    %473 = vmatpush1.msra.mxu0 %v315
    %474 = vmatprep.subr.mxu0 %v312
    %475 = vmatpush1.msra.mxu0 %v311
    %476 = vmatprep.subr.mxu0 %v308
    %477 = vmatpush1.msra.mxu0 %v307
    %478 = vmatprep.subr.mxu0 0.0
    %479 = vmatpush2.msra.mxu0 0.0
    %480 = vmatprep.subr.mxu0 0.0
    %481 = vmatpush2.msra.mxu0 0.0
    %482 = vmatprep.subr.mxu0 0.0
    %483 = vmatpush2.msra.mxu0 0.0
    %484 = vmatprep.subr.mxu0 0.0
    %485 = vmatpush2.msra.mxu0 0.0
    %486 = vmatprep.subr.mxu0 0.0
    %487 = vmatpush2.msra.mxu0 0.0
    %488 = vmatprep.subr.mxu0 0.0
    %489 = vmatpush2.msra.mxu0 0.0
    %490 = vmatprep.subr.mxu0 0.0
    %491 = vmatpush2.msra.mxu0 0.0
    %492 = vmatprep.subr.mxu0 0.0
    %493 = vmatpush2.msra.mxu0 0.0
    %494 = vmatprep.subr.mxu0 0.0
    %495 = vmatpush2.msra.mxu0 0.0
    %496 = vmatprep.subr.mxu0 0.0
    %497 = vmatpush2.msra.mxu0 0.0
    %498 = vmatprep.subr.mxu0 0.0
    %499 = vmatpush2.msra.mxu0 0.0
    %500 = vmatprep.subr.mxu0 0.0
    %501 = vmatpush2.msra.mxu0 0.0
    %502 = vmatprep.subr.mxu0 0.0
    %503 = vmatpush2.msra.mxu0 0.0
    %504 = vmatprep.subr.mxu0 0.0
    %505 = vmatpush2.msra.mxu0 0.0
    %506 = vmatprep.subr.mxu0 0.0
    %507 = vmatpush2.msra.mxu0 0.0
    %508 = vmatprep.subr.mxu0 0.0
    %509 = vmatpush2.msra.mxu0 0.0
    %510 = vmatprep.mubr.f32.mxu0 0.0
    %511 = vmatmul.mubr.f32.gmra.mxu0 %v77
    %v512 = vpop.f32.mrf.mxu0
    %v513 = vadd.f32 0.0, %v512
    %v514 = vpop.f32.mrf.mxu0
    %v515 = vadd.f32 0.0, %v514
    %516 = vmatprep.mubr.f32.mxu0 0.0
    %517 = vmatmul.mubr.f32.gmra.mxu0 %v78
    %v518 = vpop.f32.mrf.mxu0
    %v519 = vadd.f32 0.0, %v518
    %v520 = vpop.f32.mrf.mxu0
    %v521 = vadd.f32 0.0, %v520
    %522 = vdwg.mxu0
    %523 = vst [vmem:[#allocation11] sm:$0xff] %v436
    %524 = vst [vmem:[#allocation11 + $0x8] sm:$0xff] %v438
    %525 = vst [vmem:[#allocation11 + $0x10] sm:$0xff] %v513
    %526 = vst [vmem:[#allocation11 + $0x18] sm:$0xff] %v515
    %527 = vst [vmem:[#allocation11 + $0x20] sm:$0xff] %v442
    %528 = vst [vmem:[#allocation11 + $0x28] sm:$0xff] %v444
    %529 = vst [vmem:[#allocation11 + $0x30] sm:$0xff] %v519
    %530 = vst [vmem:[#allocation11 + $0x38] sm:$0xff] %v521
    %v531 = vld [vmem:[#allocation8] sm:$0xff]
    %v532 = vld [vmem:[#allocation8 + $0x8] sm:$0xff]
    %v533 = vld [vmem:[#allocation8 + $0x10] sm:$0xff]
    %v534 = vld [vmem:[#allocation8 + $0x18] sm:$0xff]
    %v535 = vld [vmem:[#allocation8 + $0x20] sm:$0xff]
    %v536 = vld [vmem:[#allocation8 + $0x28] sm:$0xff]
    %v537 = vld [vmem:[#allocation8 + $0x30] sm:$0xff]
    %v538 = vld [vmem:[#allocation8 + $0x38] sm:$0xff]
    %v539 = vld [vmem:[#allocation8 + $0x40] sm:$0xff]
    %v540 = vld [vmem:[#allocation8 + $0x48] sm:$0xff]
    %v541 = vld [vmem:[#allocation8 + $0x50] sm:$0xff]
    %v542 = vld [vmem:[#allocation8 + $0x58] sm:$0xff]
    %v543 = vld [vmem:[#allocation8 + $0x60] sm:$0xff]
    %v544 = vld [vmem:[#allocation8 + $0x68] sm:$0xff]
    %v545 = vld [vmem:[#allocation8 + $0x70] sm:$0xff]
    %v546 = vld [vmem:[#allocation8 + $0x78] sm:$0xff]
    %v547 = vld [vmem:[#allocation8 + $0x80] sm:$0xff]
    %v548 = vld [vmem:[#allocation8 + $0x88] sm:$0xff]
    %v549 = vld [vmem:[#allocation8 + $0x90] sm:$0xff]
    %v550 = vld [vmem:[#allocation8 + $0x98] sm:$0xff]
    %v551 = vld [vmem:[#allocation8 + $0xa0] sm:$0xff]
    %v552 = vld [vmem:[#allocation8 + $0xa8] sm:$0xff]
    %v553 = vld [vmem:[#allocation8 + $0xb0] sm:$0xff]
    %v554 = vld [vmem:[#allocation8 + $0xb8] sm:$0xff]
    %v555 = vld [vmem:[#allocation8 + $0xc0] sm:$0xff]
    %v556 = vld [vmem:[#allocation8 + $0xc8] sm:$0xff]
    %v557 = vld [vmem:[#allocation8 + $0xd0] sm:$0xff]
    %v558 = vld [vmem:[#allocation8 + $0xd8] sm:$0xff]
    %v559 = vld [vmem:[#allocation8 + $0xe0] sm:$0xff]
    %v560 = vld [vmem:[#allocation8 + $0xe8] sm:$0xff]
    %v561 = vld [vmem:[#allocation8 + $0xf0] sm:$0xff]
    %v562 = vld [vmem:[#allocation8 + $0xf8] sm:$0xff]
    %v563 = vld [vmem:[#allocation8 + $0x100] sm:$0xff]
    %v564 = vld [vmem:[#allocation8 + $0x108] sm:$0xff]
    %v565 = vld [vmem:[#allocation8 + $0x110] sm:$0xff]
    %v566 = vld [vmem:[#allocation8 + $0x118] sm:$0xff]
    %v567 = vld [vmem:[#allocation8 + $0x120] sm:$0xff]
    %v568 = vld [vmem:[#allocation8 + $0x128] sm:$0xff]
    %v569 = vld [vmem:[#allocation8 + $0x130] sm:$0xff]
    %v570 = vld [vmem:[#allocation8 + $0x138] sm:$0xff]
    %v571 = vld [vmem:[#allocation8 + $0x140] sm:$0xff]
    %v572 = vld [vmem:[#allocation8 + $0x148] sm:$0xff]
    %v573 = vld [vmem:[#allocation8 + $0x150] sm:$0xff]
    %v574 = vld [vmem:[#allocation8 + $0x158] sm:$0xff]
    %v575 = vld [vmem:[#allocation8 + $0x160] sm:$0xff]
    %v576 = vld [vmem:[#allocation8 + $0x168] sm:$0xff]
    %v577 = vld [vmem:[#allocation8 + $0x170] sm:$0xff]
    %v578 = vld [vmem:[#allocation8 + $0x178] sm:$0xff]
    %v579 = vld [vmem:[#allocation8 + $0x180] sm:$0xff]
    %v580 = vld [vmem:[#allocation8 + $0x188] sm:$0xff]
    %v581 = vld [vmem:[#allocation8 + $0x190] sm:$0xff]
    %v582 = vld [vmem:[#allocation8 + $0x198] sm:$0xff]
    %v583 = vld [vmem:[#allocation8 + $0x1a0] sm:$0xff]
    %v584 = vld [vmem:[#allocation8 + $0x1a8] sm:$0xff]
    %v585 = vld [vmem:[#allocation8 + $0x1b0] sm:$0xff]
    %v586 = vld [vmem:[#allocation8 + $0x1b8] sm:$0xff]
    %v587 = vld [vmem:[#allocation8 + $0x1c0] sm:$0xff]
    %v588 = vld [vmem:[#allocation8 + $0x1c8] sm:$0xff]
    %v589 = vld [vmem:[#allocation8 + $0x1d0] sm:$0xff]
    %v590 = vld [vmem:[#allocation8 + $0x1d8] sm:$0xff]
    %v591 = vld [vmem:[#allocation8 + $0x1e0] sm:$0xff]
    %v592 = vld [vmem:[#allocation8 + $0x1e8] sm:$0xff]
    %v593 = vld [vmem:[#allocation8 + $0x1f0] sm:$0xff]
    %v594 = vld [vmem:[#allocation8 + $0x1f8] sm:$0xff]
    %595 = vmatprep.subr.mxu0 %v592
    %596 = vmatpush1.msra.mxu0 %v591
    %597 = vmatprep.subr.mxu0 %v588
    %598 = vmatpush1.msra.mxu0 %v587
    %599 = vmatprep.subr.mxu0 %v584
    %600 = vmatpush1.msra.mxu0 %v583
    %601 = vmatprep.subr.mxu0 %v580
    %602 = vmatpush1.msra.mxu0 %v579
    %603 = vmatprep.subr.mxu0 %v576
    %604 = vmatpush1.msra.mxu0 %v575
    %605 = vmatprep.subr.mxu0 %v572
    %606 = vmatpush1.msra.mxu0 %v571
    %607 = vmatprep.subr.mxu0 %v568
    %608 = vmatpush1.msra.mxu0 %v567
    %609 = vmatprep.subr.mxu0 %v564
    %610 = vmatpush1.msra.mxu0 %v563
    %611 = vmatprep.subr.mxu0 %v560
    %612 = vmatpush1.msra.mxu0 %v559
    %613 = vmatprep.subr.mxu0 %v556
    %614 = vmatpush1.msra.mxu0 %v555
    %615 = vmatprep.subr.mxu0 %v552
    %616 = vmatpush1.msra.mxu0 %v551
    %617 = vmatprep.subr.mxu0 %v548
    %618 = vmatpush1.msra.mxu0 %v547
    %619 = vmatprep.subr.mxu0 %v544
    %620 = vmatpush1.msra.mxu0 %v543
    %621 = vmatprep.subr.mxu0 %v540
    %622 = vmatpush1.msra.mxu0 %v539
    %623 = vmatprep.subr.mxu0 %v536
    %624 = vmatpush1.msra.mxu0 %v535
    %625 = vmatprep.subr.mxu0 %v532
    %626 = vmatpush1.msra.mxu0 %v531
    %627 = vmatprep.subr.mxu0 0.0
    %628 = vmatpush2.msra.mxu0 0.0
    %629 = vmatprep.subr.mxu0 0.0
    %630 = vmatpush2.msra.mxu0 0.0
    %631 = vmatprep.subr.mxu0 0.0
    %632 = vmatpush2.msra.mxu0 0.0
    %633 = vmatprep.subr.mxu0 0.0
    %634 = vmatpush2.msra.mxu0 0.0
    %635 = vmatprep.subr.mxu0 0.0
    %636 = vmatpush2.msra.mxu0 0.0
    %637 = vmatprep.subr.mxu0 0.0
    %638 = vmatpush2.msra.mxu0 0.0
    %639 = vmatprep.subr.mxu0 0.0
    %640 = vmatpush2.msra.mxu0 0.0
    %641 = vmatprep.subr.mxu0 0.0
    %642 = vmatpush2.msra.mxu0 0.0
    %643 = vmatprep.subr.mxu0 0.0
    %644 = vmatpush2.msra.mxu0 0.0
    %645 = vmatprep.subr.mxu0 0.0
    %646 = vmatpush2.msra.mxu0 0.0
    %647 = vmatprep.subr.mxu0 0.0
    %648 = vmatpush2.msra.mxu0 0.0
    %649 = vmatprep.subr.mxu0 0.0
    %650 = vmatpush2.msra.mxu0 0.0
    %651 = vmatprep.subr.mxu0 0.0
    %652 = vmatpush2.msra.mxu0 0.0
    %653 = vmatprep.subr.mxu0 0.0
    %654 = vmatpush2.msra.mxu0 0.0
    %655 = vmatprep.subr.mxu0 0.0
    %656 = vmatpush2.msra.mxu0 0.0
    %657 = vmatprep.subr.mxu0 0.0
    %658 = vmatpush2.msra.mxu0 0.0
    %659 = vmatprep.mubr.f32.mxu0 0.0
    %660 = vmatmul.mubr.f32.gmra.mxu0 %v77
    %v661 = vpop.f32.mrf.mxu0
    %v662 = vadd.f32 0.0, %v661
    %v663 = vpop.f32.mrf.mxu0
    %v664 = vadd.f32 0.0, %v663
    %665 = vmatprep.mubr.f32.mxu0 0.0
    %666 = vmatmul.mubr.f32.gmra.mxu0 %v78
    %v667 = vpop.f32.mrf.mxu0
    %v668 = vadd.f32 0.0, %v667
    %v669 = vpop.f32.mrf.mxu0
    %v670 = vadd.f32 0.0, %v669
    %671 = vdwg.mxu0
    %672 = vmatprep.subr.mxu0 %v594
    %673 = vmatpush1.msra.mxu0 %v593
    %674 = vmatprep.subr.mxu0 %v590
    %675 = vmatpush1.msra.mxu0 %v589
    %676 = vmatprep.subr.mxu0 %v586
    %677 = vmatpush1.msra.mxu0 %v585
    %678 = vmatprep.subr.mxu0 %v582
    %679 = vmatpush1.msra.mxu0 %v581
    %680 = vmatprep.subr.mxu0 %v578
    %681 = vmatpush1.msra.mxu0 %v577
    %682 = vmatprep.subr.mxu0 %v574
    %683 = vmatpush1.msra.mxu0 %v573
    %684 = vmatprep.subr.mxu0 %v570
    %685 = vmatpush1.msra.mxu0 %v569
    %686 = vmatprep.subr.mxu0 %v566
    %687 = vmatpush1.msra.mxu0 %v565
    %688 = vmatprep.subr.mxu0 %v562
    %689 = vmatpush1.msra.mxu0 %v561
    %690 = vmatprep.subr.mxu0 %v558
    %691 = vmatpush1.msra.mxu0 %v557
    %692 = vmatprep.subr.mxu0 %v554
    %693 = vmatpush1.msra.mxu0 %v553
    %694 = vmatprep.subr.mxu0 %v550
    %695 = vmatpush1.msra.mxu0 %v549
    %696 = vmatprep.subr.mxu0 %v546
    %697 = vmatpush1.msra.mxu0 %v545
    %698 = vmatprep.subr.mxu0 %v542
    %699 = vmatpush1.msra.mxu0 %v541
    %700 = vmatprep.subr.mxu0 %v538
    %701 = vmatpush1.msra.mxu0 %v537
    %702 = vmatprep.subr.mxu0 %v534
    %703 = vmatpush1.msra.mxu0 %v533
    %704 = vmatprep.subr.mxu0 0.0
    %705 = vmatpush2.msra.mxu0 0.0
    %706 = vmatprep.subr.mxu0 0.0
    %707 = vmatpush2.msra.mxu0 0.0
    %708 = vmatprep.subr.mxu0 0.0
    %709 = vmatpush2.msra.mxu0 0.0
    %710 = vmatprep.subr.mxu0 0.0
    %711 = vmatpush2.msra.mxu0 0.0
    %712 = vmatprep.subr.mxu0 0.0
    %713 = vmatpush2.msra.mxu0 0.0
    %714 = vmatprep.subr.mxu0 0.0
    %715 = vmatpush2.msra.mxu0 0.0
    %716 = vmatprep.subr.mxu0 0.0
    %717 = vmatpush2.msra.mxu0 0.0
    %718 = vmatprep.subr.mxu0 0.0
    %719 = vmatpush2.msra.mxu0 0.0
    %720 = vmatprep.subr.mxu0 0.0
    %721 = vmatpush2.msra.mxu0 0.0
    %722 = vmatprep.subr.mxu0 0.0
    %723 = vmatpush2.msra.mxu0 0.0
    %724 = vmatprep.subr.mxu0 0.0
    %725 = vmatpush2.msra.mxu0 0.0
    %726 = vmatprep.subr.mxu0 0.0
    %727 = vmatpush2.msra.mxu0 0.0
    %728 = vmatprep.subr.mxu0 0.0
    %729 = vmatpush2.msra.mxu0 0.0
    %730 = vmatprep.subr.mxu0 0.0
    %731 = vmatpush2.msra.mxu0 0.0
    %732 = vmatprep.subr.mxu0 0.0
    %733 = vmatpush2.msra.mxu0 0.0
    %734 = vmatprep.subr.mxu0 0.0
    %735 = vmatpush2.msra.mxu0 0.0
    %736 = vmatprep.mubr.f32.mxu0 0.0
    %737 = vmatmul.mubr.f32.gmra.mxu0 %v77
    %v738 = vpop.f32.mrf.mxu0
    %v739 = vadd.f32 0.0, %v738
    %v740 = vpop.f32.mrf.mxu0
    %v741 = vadd.f32 0.0, %v740
    %742 = vmatprep.mubr.f32.mxu0 0.0
    %743 = vmatmul.mubr.f32.gmra.mxu0 %v78
    %v744 = vpop.f32.mrf.mxu0
    %v745 = vadd.f32 0.0, %v744
    %v746 = vpop.f32.mrf.mxu0
    %v747 = vadd.f32 0.0, %v746
    %748 = vdwg.mxu0
    %749 = vst [vmem:[#allocation13] sm:$0xff] %v662
    %750 = vst [vmem:[#allocation13 + $0x8] sm:$0xff] %v664
    %751 = vst [vmem:[#allocation13 + $0x10] sm:$0xff] %v739
    %752 = vst [vmem:[#allocation13 + $0x18] sm:$0xff] %v741
    %753 = vst [vmem:[#allocation13 + $0x20] sm:$0xff] %v668
    %754 = vst [vmem:[#allocation13 + $0x28] sm:$0xff] %v670
    %755 = vst [vmem:[#allocation13 + $0x30] sm:$0xff] %v745
    %756 = vst [vmem:[#allocation13 + $0x38] sm:$0xff] %v747
    // Predicated region
    $region34: #{tpu_custom_call.1} parent=1 // pred_check
      _
    $region35: #{tpu_custom_call.1} parent=1 // pred_check_branch
      %758 = sbr.rel (0) target = $region37
    $region36: #{tpu_custom_call.1} parent=1 // pred_region
      %s760 = ssub.s32 1024, 1024
      %761 = vsyncadd [#allocation4], %s760
      %s762 = sshll.u32 [#allocation10], 4
      %s763 = int_to_ptr.vmem [resolvable:$true] %s762
      %768 = dma.vmem_to_hbm [thread:$0]  %s763, 1024, %s4, [#allocation4], 512, 512, 32
    $region37: #{tpu_custom_call.1} parent=1 // pred_fallthru
      _
    // Predicated region
    $region38: #{tpu_custom_call.1} parent=1 // pred_check
      _
    $region39: #{tpu_custom_call.1} parent=1 // pred_check_branch
      %770 = sbr.rel (0) target = $region41
    $region40: #{tpu_custom_call.1} parent=1 // pred_region
      %s772 = ssub.s32 1024, 1024
      %773 = vsyncadd [#allocation12], %s772
      %s774 = sshll.u32 [#allocation11], 4
      %s775 = int_to_ptr.vmem [resolvable:$true] %s774
      %780 = dma.vmem_to_hbm [thread:$0]  %s775, 1024, %s5, [#allocation12], 512, 512, 32
    $region41: #{tpu_custom_call.1} parent=1 // pred_fallthru
      _
    // Predicated region
    $region42: #{tpu_custom_call.1} parent=1 // pred_check
      _
    $region43: #{tpu_custom_call.1} parent=1 // pred_check_branch
      %782 = sbr.rel (0) target = $region45
    $region44: #{tpu_custom_call.1} parent=1 // pred_region
      %s784 = ssub.s32 1024, 1024
      %785 = vsyncadd [#allocation12], %s784
      %s786 = sshll.u32 [#allocation13], 4
      %s787 = int_to_ptr.vmem [resolvable:$true] %s786
      %792 = dma.vmem_to_hbm [thread:$0]  %s787, 1024, %s6, [#allocation12], 512, 512, 32
    $region45: #{tpu_custom_call.1} parent=1 // pred_fallthru
      _
    // Predicated region
    $region46: #{tpu_custom_call.1} parent=1 // pred_check
      _
    $region47: #{tpu_custom_call.1} parent=1 // pred_check_branch
      %794 = sbr.rel (0) target = $region49
    $region48: #{tpu_custom_call.1} parent=1 // pred_region
      %795 = dma.done [#allocation4], 1024
    $region49: #{tpu_custom_call.1} parent=1 // pred_fallthru
      _
    // Predicated region
    $region50: #{tpu_custom_call.1} parent=1 // pred_check
      _
    $region51: #{tpu_custom_call.1} parent=1 // pred_check_branch
      %797 = sbr.rel (0) target = $region53
    $region52: #{tpu_custom_call.1} parent=1 // pred_region
      %798 = dma.done [#allocation12], 1024
    $region53: #{tpu_custom_call.1} parent=1 // pred_fallthru
      _
    // Predicated region
    $region54: #{tpu_custom_call.1} parent=1 // pred_check
      _
    $region55: #{tpu_custom_call.1} parent=1 // pred_check_branch
      %800 = sbr.rel (0) target = $region57
    $region56: #{tpu_custom_call.1} parent=1 // pred_region
      %801 = dma.done [#allocation12], 1024
    $region57: #{tpu_custom_call.1} parent=1 // pred_fallthru
      _
    %802 = vsyncpa [#allocation3], 1
    %803 = vsyncpa [#allocation6], 1
    %804 = vsyncpa [#allocation9], 1
    %805 = vsyncpa [#allocation4], 1
    %806 = vsyncpa [#allocation12], 1

</llo_original>
